<compile_context>
chip_gen: v6e
topology: v6e:2x2x1
jax: 0.10.0
libtpu: 0.0.40
codegen_flags: <defaults>
</compile_context>

<pallas_src>
import jax
import jax.numpy as jnp
from jax.experimental import pallas as pl
from jax.experimental.pallas import tpu as pltpu


def _round_up(x, m):
    return ((x + m - 1) // m) * m


def _pick_tile_b(batch, in_p, resident_bytes):
    """Largest batch tile keeping (2 double-buffered bf16 x blocks + resident
    weights) under ~24 MiB, so it fits v7x's 32 MiB scoped VMEM default."""
    if batch <= 512:
        return _round_up(batch, 8)            # single tile for small batches
    budget = 24 * 1024 * 1024
    tile = 1024                               # multiples of 256: fill 2x256 MXU
    while tile > 256 and (2 * tile * in_p * 2 + resident_bytes) > budget:
        tile //= 2
    return tile


def _mlp_kernel(x_ref, w1t_ref, p_ref, o_ref):
    # x_ref:   (TILE_B, in_p)  bf16
    # w1t_ref: (in_p, hid_p)   bf16   (resident across the whole grid)
    # p_ref:   (8, hid_p)      f32    row 0: b1, row 1: w2[0], row 2: b2 (bcast)
    # o_ref:   (1, 1, TILE_B)  f32    lane-dense sigmoid row for this batch tile
    p = p_ref[...]

    # fc1 on the MXU: bf16 operands, f32 accumulation. W1 was pre-transposed at
    # weight-load time, so this is a plain ((1,),(0,)) contraction.
    h = jnp.dot(x_ref[...], w1t_ref[...], preferred_element_type=jnp.float32)
    h = jnp.maximum(h + p[0:1, :], 0.0)       # bias + ReLU, f32 on the VPU

    # Dropout(p=0.3): identity in eval mode (PyTorch inverted dropout).

    # fc2 (hidden -> 1): f32 VPU multiply + lane reduce — avoids a 1-column MXU
    # drain; padded hidden lanes are zero in both h and the packed w2 row.
    z = jnp.sum(h * p[1:2, :], axis=-1, keepdims=True) + p[2:3, 0:1]  # (TILE_B, 1)

    s = jax.nn.sigmoid(z)                     # EUP logistic, f32
    # Store as a (1, TILE_B) row so the output block is lane-dense (unmasked
    # vst for TILE_B >= 128) instead of a 1-lane masked column store.
    o_ref[...] = jnp.transpose(s)[None].astype(o_ref.dtype)


def prepare_params(w1, b1, w2, b2):
    """One-time (outside jit) weight prep: transpose W1 to (in, hid), zero-pad
    in/hidden dims to multiples of 128, cast the MXU operand to bf16, and pack
    the small per-call parameters (b1, w2 row, b2) into a single f32 block."""
    hid, in_dim = w1.shape
    out_dim = w2.shape[0]
    assert out_dim == 1, "BinaryClassifier produces a single sigmoid value"

    in_p = _round_up(in_dim, 128)
    hid_p = _round_up(hid, 128)

    w1t = jnp.zeros((in_p, hid_p), jnp.float32)
    w1t = w1t.at[:in_dim, :hid].set(jnp.asarray(w1, jnp.float32).T)
    w1t = w1t.astype(jnp.bfloat16)

    params = jnp.zeros((8, hid_p), jnp.float32)
    params = params.at[0, :hid].set(jnp.asarray(b1, jnp.float32))
    params = params.at[1, :hid].set(jnp.asarray(w2, jnp.float32)[0])
    params = params.at[2, :].set(jnp.asarray(b2, jnp.float32)[0])
    return w1t, params


def binary_classifier_forward(x, w1t_p, params_p):
    """
    x:        (B, input_dim) f32
    w1t_p:    (in_p, hid_p)  bf16  from prepare_params
    params_p: (8, hid_p)     f32   from prepare_params
    returns   (B, 1)         f32   sigmoid activations (PyTorch eval forward)
    """
    batch, in_dim = x.shape
    in_p, hid_p = w1t_p.shape
    resident_bytes = w1t_p.size * 2 + params_p.size * 4
    tile_b = _pick_tile_b(batch, in_p, resident_bytes)
    b_pad = _round_up(batch, tile_b)
    num_tiles = b_pad // tile_b

    # Zero-pad batch to the tile and features to in_p; bf16 halves x HBM traffic.
    x_p = jnp.pad(x.astype(jnp.bfloat16), ((0, b_pad - batch), (0, in_p - in_dim)))

    out_rows = pl.pallas_call(
        _mlp_kernel,
        out_shape=jax.ShapeDtypeStruct((num_tiles, 1, tile_b), jnp.float32),
        grid=(num_tiles,),
        in_specs=[
            pl.BlockSpec((tile_b, in_p), lambda i: (i, 0)),  # x: new tile per step
            pl.BlockSpec((in_p, hid_p), lambda i: (0, 0)),   # W1^T: DMA once, resident
            pl.BlockSpec((8, hid_p), lambda i: (0, 0)),      # packed b1/w2/b2: resident
        ],
        out_specs=pl.BlockSpec((1, 1, tile_b), lambda i: (i, 0, 0)),
        compiler_params=pltpu.CompilerParams(
            dimension_semantics=("parallel",),               # 2 TCs on v7x
            vmem_limit_bytes=32 * 1024 * 1024,
        ),
    )(x_p, w1t_p, params_p)

    # Wrapper-side layout plumbing back to PyTorch's (B, 1).
    return out_rows.reshape(b_pad)[:batch].reshape(batch, 1)


if __name__ == "__main__":
    # Small shapes consistent with the module: (batch, input_features) -> hidden -> 1.
    batch, input_dim, hidden_dim, output_dim = 8, 32, 32, 1

    key = jax.random.PRNGKey(0)
    kx, kw1, kb1, kw2, kb2 = jax.random.split(key, 5)

    x = jax.random.normal(kx, (batch, input_dim), dtype=jnp.float32)
    # PyTorch nn.Linear layout: weight (out_features, in_features), bias (out_features,)
    w1 = jax.random.normal(kw1, (hidden_dim, input_dim), dtype=jnp.float32) * 0.1
    b1 = jax.random.normal(kb1, (hidden_dim,), dtype=jnp.float32) * 0.1
    w2 = jax.random.normal(kw2, (output_dim, hidden_dim), dtype=jnp.float32) * 0.1
    b2 = jax.random.normal(kb2, (output_dim,), dtype=jnp.float32) * 0.1

    # One-time weight prep (amortized over all forward calls).
    w1t_p, params_p = prepare_params(w1, b1, w2, b2)

    fwd = jax.jit(binary_classifier_forward)
    out = jax.block_until_ready(fwd(x, w1t_p, params_p))

    # Pure-JAX f32 reference (eval-mode dropout == identity).
    ref = jax.nn.sigmoid(jnp.maximum(x @ w1.T + b1, 0.0) @ w2.T + b2)

    assert out.shape == (batch, output_dim)
    # bf16 MXU operands with f32 accumulation -> loosen tolerance per review.
    assert jnp.allclose(out, ref, atol=2e-2, rtol=2e-2), float(jnp.max(jnp.abs(out - ref)))

    print("KERNEL_OK")
</pallas_src>

<mosaic_0001>
module attributes {stable_mosaic.version = 11 : i64} {
  func.func @_mlp_kernel(%arg0: i32, %arg1: memref<8x128xbf16, #tpu.memory_space<vmem>>, %arg2: memref<128x128xbf16, #tpu.memory_space<vmem>>, %arg3: memref<8x128xf32, #tpu.memory_space<vmem>>, %arg4: memref<1x1x8xf32, #tpu.memory_space<vmem>>) attributes {dimension_semantics = [#tpu.dimension_semantics<parallel>], iteration_bounds = array<i64: 1>, scalar_prefetch = 0 : i64, scratch_operands = 0 : i64, tpu.core_type = #tpu.core_type<tc>, window_params = [{transform_indices = @transform_0, window_bounds = array<i64: 8, 128>}, {pipeline_mode = #tpu.pipeline_mode<synchronous>, transform_indices = @transform_1, window_bounds = array<i64: 128, 128>}, {pipeline_mode = #tpu.pipeline_mode<synchronous>, transform_indices = @transform_2, window_bounds = array<i64: 8, 128>}, {transform_indices = @transform_3, window_bounds = array<i64: 1, 1, 8>}]} {
    %c0 = arith.constant 0 : index
    %c0_0 = arith.constant 0 : index
    %0 = vector.load %arg3[%c0, %c0_0] : memref<8x128xf32, #tpu.memory_space<vmem>>, vector<8x128xf32>
    %c0_1 = arith.constant 0 : index
    %c0_2 = arith.constant 0 : index
    %1 = vector.load %arg1[%c0_1, %c0_2] : memref<8x128xbf16, #tpu.memory_space<vmem>>, vector<8x128xbf16>
    %c0_3 = arith.constant 0 : index
    %c0_4 = arith.constant 0 : index
    %2 = vector.load %arg2[%c0_3, %c0_4] : memref<128x128xbf16, #tpu.memory_space<vmem>>, vector<128x128xbf16>
    %cst = arith.constant dense<0.000000e+00> : vector<8x128xf32>
    %3 = tpu.matmul %1, %2, %cst {dimension_numbers = #tpu.dot_dimension_numbers<[1], [0], [0], [1], [0, 0, 1, 1], [], []>} : vector<8x128xbf16>, vector<128x128xbf16>, vector<8x128xf32> -> vector<8x128xf32>
    %4 = vector.extract_strided_slice %0 {offsets = [0, 0], sizes = [1, 128], strides = [1, 1]} : vector<8x128xf32> to vector<1x128xf32>
    %5 = vector.broadcast %4 : vector<1x128xf32> to vector<8x128xf32>
    %6 = arith.addf %3, %5 : vector<8x128xf32>
    %cst_5 = arith.constant 0.000000e+00 : f32
    %7 = vector.broadcast %cst_5 : f32 to vector<8x128xf32>
    %8 = arith.maximumf %6, %7 : vector<8x128xf32>
    %9 = vector.extract_strided_slice %0 {offsets = [1, 0], sizes = [1, 128], strides = [1, 1]} : vector<8x128xf32> to vector<1x128xf32>
    %10 = vector.broadcast %9 : vector<1x128xf32> to vector<8x128xf32>
    %11 = arith.mulf %8, %10 : vector<8x128xf32>
    %cst_6 = arith.constant dense<0.000000e+00> : vector<8xf32>
    %12 = vector.multi_reduction <add>, %11, %cst_6 [1] : vector<8x128xf32> to vector<8xf32>
    %13 = vector.shape_cast %12 : vector<8xf32> to vector<8x1xf32>
    %14 = vector.extract_strided_slice %0 {offsets = [2, 0], sizes = [1, 1], strides = [1, 1]} : vector<8x128xf32> to vector<1x1xf32>
    %15 = vector.broadcast %14 : vector<1x1xf32> to vector<8x1xf32>
    %16 = arith.addf %13, %15 : vector<8x1xf32>
    %17 = arith.negf %16 : vector<8x1xf32>
    %18 = math.exp %17 : vector<8x1xf32>
    %cst_7 = arith.constant 1.000000e+00 : f32
    %19 = vector.broadcast %cst_7 : f32 to vector<8x1xf32>
    %20 = arith.addf %19, %18 : vector<8x1xf32>
    %21 = arith.divf %19, %20 : vector<8x1xf32>
    %22 = tpu.transpose %21, [1, 0] : vector<8x1xf32> -> vector<1x8xf32>
    %23 = vector.shape_cast %22 : vector<1x8xf32> to vector<1x1x8xf32>
    %c0_8 = arith.constant 0 : index
    %c0_9 = arith.constant 0 : index
    %c0_10 = arith.constant 0 : index
    %24 = vector.load %arg4[%c0_8, %c0_9, %c0_10] : memref<1x1x8xf32, #tpu.memory_space<vmem>>, vector<1x1x8xf32>
    tpu.vector_store %arg4[%c0_8, %c0_9, %c0_10], %23 {strides = array<i32>} : memref<1x1x8xf32, #tpu.memory_space<vmem>>, vector<1x1x8xf32>,
    return
  }
  func.func @transform_0(%arg0: i32) -> (i32, i32) {
    %c0_i32 = arith.constant 0 : i32
    %c0_i32_0 = arith.constant 0 : i32
    return %arg0, %c0_i32 : i32, i32
  }
  func.func @transform_1(%arg0: i32) -> (i32, i32) {
    %c0_i32 = arith.constant 0 : i32
    %c0_i32_0 = arith.constant 0 : i32
    %c0_i32_1 = arith.constant 0 : i32
    return %c0_i32, %c0_i32_0 : i32, i32
  }
  func.func @transform_2(%arg0: i32) -> (i32, i32) {
    %c0_i32 = arith.constant 0 : i32
    %c0_i32_0 = arith.constant 0 : i32
    %c0_i32_1 = arith.constant 0 : i32
    return %c0_i32, %c0_i32_0 : i32, i32
  }
  func.func @transform_3(%arg0: i32) -> (i32, i32, i32) {
    %c0_i32 = arith.constant 0 : i32
    %c0_i32_0 = arith.constant 0 : i32
    %c0_i32_1 = arith.constant 0 : i32
    return %arg0, %c0_i32, %c0_i32_0 : i32, i32, i32
  }
}

</mosaic_0001>

<llo_original>
// kernel: binary_classifier_forward.1
$region0: #{binary_classifier_forward.1}
  #allocation0 [shape = 'u32[]', space=smem, size = 0x4, offset = 0x4, fixed_abs, tag = 'smem constant byte address 0x4 - core index']
  #allocation1 [shape = 'u32[144,128]{1,0:T(1,128)}', space=vmem, size = 0x12000, scoped, tag = 'internal scratch']
  %s0 = inlined_call_operand.vmem [shape: bf16[8,128], index: 0, kind: input, shape index: {}]
  %s1 = inlined_call_operand.hbm [shape: bf16[128,128], index: 1, kind: input, shape index: {}]
  %s2 = inlined_call_operand.vmem [shape: f32[8,128], index: 2, kind: input, shape index: {}]
  %s3 = inlined_call_operand.hbm [shape: f32[1,1,8], index: 3, kind: output, shape index: {}]
  %s4 = sld [smem:[#allocation0]]
  $region26: #{binary_classifier_forward.1} parent=0
    _
  %s6 = ssub.s32 1, %s4
  %s7 = scalar_select 0, %s6, %s4
  $region1: #{binary_classifier_forward.1} parent=0
    #allocation2 [shape = 'u8[32768]{0}', space=vmem, size = 0x8000, scoped, tag = 'input window, operand 1, single buffered']
    #allocation3 [shape = 's32[1]{0}', space=sflag, size = 0x4, scoped, tag = 'scoped memory for binary_classifier_forward.1']
    #allocation4 [shape = 's32[1]{0}', space=sflag, size = 0x4, scoped, tag = 'scoped memory for binary_classifier_forward.1']
    #allocation5 [shape = 'u8[512]{0}', space=vmem, size = 0x400, scoped, tag = 'output window, operand 0, single buffered']
    %8 = vsyncpa [#allocation3], 0
    %9 = vsyncpa [#allocation4], 0
    // Predicated region
    $region2: #{binary_classifier_forward.1} parent=1 // pred_check
      _
    $region3: #{binary_classifier_forward.1} parent=1 // pred_check_branch
      %11 = sbr.rel (0) target = $region5
    $region4: #{binary_classifier_forward.1} parent=1 // pred_region
      _
    $region5: #{binary_classifier_forward.1} parent=1 // pred_fallthru
      _
    // Predicated region
    $region6: #{binary_classifier_forward.1} parent=1 // pred_check
      _
    $region7: #{binary_classifier_forward.1} parent=1 // pred_check_branch
      %13 = sbr.rel (0) target = $region9
    $region8: #{binary_classifier_forward.1} parent=1 // pred_region
      %s15 = ssub.s32 1024, 1024
      %16 = vsyncadd [#allocation3], %s15
      %s17 = sshll.u32 [#allocation2], 4
      %s18 = int_to_ptr.vmem [resolvable:$true] %s17
      %23 = dma.hbm_to_vmem [thread:$0]  %s1, 1024, %s18, [#allocation3], 64, 64, 4
    $region9: #{binary_classifier_forward.1} parent=1 // pred_fallthru
      _
    // Predicated region
    $region10: #{binary_classifier_forward.1} parent=1 // pred_check
      _
    $region11: #{binary_classifier_forward.1} parent=1 // pred_check_branch
      %25 = sbr.rel (0) target = $region13
    $region12: #{binary_classifier_forward.1} parent=1 // pred_region
      _
    $region13: #{binary_classifier_forward.1} parent=1 // pred_fallthru
      _
    // Predicated region
    $region14: #{binary_classifier_forward.1} parent=1 // pred_check
      _
    $region15: #{binary_classifier_forward.1} parent=1 // pred_check_branch
      %27 = sbr.rel (0) target = $region17
    $region16: #{binary_classifier_forward.1} parent=1 // pred_region
      %28 = dma.done [#allocation3], 1024
    $region17: #{binary_classifier_forward.1} parent=1 // pred_fallthru
      _
    %v30 = vld [vmem:[%s2] sm:$0xff]
    %v31 = vld [vmem:[%s0] sm:$0xf]
    %v32 = vld [vmem:[#allocation2] sm:$0xf]
    %v33 = vld [vmem:[#allocation2 + $0x4] sm:$0xf]
    %v34 = vld [vmem:[#allocation2 + $0x8] sm:$0xf]
    %v35 = vld [vmem:[#allocation2 + $0xc] sm:$0xf]
    %v36 = vld [vmem:[#allocation2 + $0x10] sm:$0xf]
    %v37 = vld [vmem:[#allocation2 + $0x14] sm:$0xf]
    %v38 = vld [vmem:[#allocation2 + $0x18] sm:$0xf]
    %v39 = vld [vmem:[#allocation2 + $0x1c] sm:$0xf]
    %v40 = vld [vmem:[#allocation2 + $0x20] sm:$0xf]
    %v41 = vld [vmem:[#allocation2 + $0x24] sm:$0xf]
    %v42 = vld [vmem:[#allocation2 + $0x28] sm:$0xf]
    %v43 = vld [vmem:[#allocation2 + $0x2c] sm:$0xf]
    %v44 = vld [vmem:[#allocation2 + $0x30] sm:$0xf]
    %v45 = vld [vmem:[#allocation2 + $0x34] sm:$0xf]
    %v46 = vld [vmem:[#allocation2 + $0x38] sm:$0xf]
    %v47 = vld [vmem:[#allocation2 + $0x3c] sm:$0xf]
    %v48 = vlaneseq
    %v49 = vshrl.u32 %v48, 7
    %v50 = vsub.s32 0, %v49
    %v51 = vrot.slane %v30, %v50
    %v68 = vunpack.c.l.b16 %v32
    %v69 = vunpack.c.l.b16 %v33
    %v70 = vunpack.c.l.b16 %v34
    %v71 = vunpack.c.l.b16 %v35
    %v72 = vunpack.c.l.b16 %v36
    %v73 = vunpack.c.l.b16 %v37
    %v74 = vunpack.c.l.b16 %v38
    %v75 = vunpack.c.l.b16 %v39
    %v76 = vunpack.c.l.b16 %v40
    %v77 = vunpack.c.l.b16 %v41
    %v78 = vunpack.c.l.b16 %v42
    %v79 = vunpack.c.l.b16 %v43
    %v80 = vunpack.c.l.b16 %v44
    %v81 = vunpack.c.l.b16 %v45
    %v82 = vunpack.c.l.b16 %v46
    %v83 = vunpack.c.l.b16 %v47
    %v84 = vpack.c.b16 %v69, %v68
    %v85 = vpack.c.b16 %v71, %v70
    %v86 = vpack.c.b16 %v73, %v72
    %v87 = vpack.c.b16 %v75, %v74
    %v88 = vpack.c.b16 %v77, %v76
    %v89 = vpack.c.b16 %v79, %v78
    %v90 = vpack.c.b16 %v81, %v80
    %v91 = vpack.c.b16 %v83, %v82
    %100 = vmatprep.subr.bf16.mxu0 0
    %101 = vmatpush1.bf16.msra.mxu0 %v91
    %102 = vmatprep.subr.bf16.mxu0 0
    %103 = vmatpush1.bf16.msra.mxu0 %v90
    %104 = vmatprep.subr.bf16.mxu0 0
    %105 = vmatpush1.bf16.msra.mxu0 %v89
    %106 = vmatprep.subr.bf16.mxu0 0
    %107 = vmatpush1.bf16.msra.mxu0 %v88
    %108 = vmatprep.subr.bf16.mxu0 0
    %109 = vmatpush1.bf16.msra.mxu0 %v87
    %110 = vmatprep.subr.bf16.mxu0 0
    %111 = vmatpush1.bf16.msra.mxu0 %v86
    %112 = vmatprep.subr.bf16.mxu0 0
    %113 = vmatpush1.bf16.msra.mxu0 %v85
    %114 = vmatprep.subr.bf16.mxu0 0
    %115 = vmatpush1.bf16.msra.mxu0 %v84
    %116 = vmatprep.subr.bf16.mxu0 0
    %117 = vmatpush2.bf16.msra.mxu0 0
    %118 = vmatprep.subr.bf16.mxu0 0
    %119 = vmatpush2.bf16.msra.mxu0 0
    %120 = vmatprep.subr.bf16.mxu0 0
    %121 = vmatpush2.bf16.msra.mxu0 0
    %122 = vmatprep.subr.bf16.mxu0 0
    %123 = vmatpush2.bf16.msra.mxu0 0
    %124 = vmatprep.subr.bf16.mxu0 0
    %125 = vmatpush2.bf16.msra.mxu0 0
    %126 = vmatprep.subr.bf16.mxu0 0
    %127 = vmatpush2.bf16.msra.mxu0 0
    %128 = vmatprep.subr.bf16.mxu0 0
    %129 = vmatpush2.bf16.msra.mxu0 0
    %130 = vmatprep.subr.bf16.mxu0 0
    %131 = vmatpush2.bf16.msra.mxu0 0
    %132 = vmatprep.mubr.bf16.mxu0 0
    %133 = vmatmul.mubr.bf16.gmra.mxu0 %v31
    %v134 = vpop.f32.mrf.mxu0
    %v135 = vadd.f32 %v51, %v134
    %v136 = vpop.f32.mrf.mxu0
    %v137 = vpop.f32.mrf.mxu0
    %v138 = vpop.f32.mrf.mxu0
    %139 = vdwg.mxu0
    %v140 = vmax.f32 %v135, 0.0
    %v141 = vlaneseq
    %v142 = vshrl.u32 %v141, 7
    %v143 = vsub.s32 1, %v142
    %v144 = vrot.slane %v30, %v143
    %v145 = vmul.f32 %v140, %v144
    %146 = vadd.xlane.f32.xlu0 %v145
    %v147 = vpop.xlane.xlu0 %146
    %v148 = vlaneseq
    %v149 = vshrl.u32 %v148, 7
    %v150 = vsub.s32 2, %v149
    %v151 = vrot.slane %v30, %v150
    %v152 = vadd.f32 %v147, %v151
    %v153 = vxor.u32 %v152, 2147483648
    %v154 = vmul.f32 %v153, 1.442695
    %v155 = vpow.pop %v154
    %v156 = vadd.f32 %v155, 1.0
    %v157 = vrcp.pop %v156
    %v158 = vmul.f32 1.0, %v157
    %159 = vxpose.xlu0.b32.start [1/16] %v158, 128
    %160 = vxpose.xlu0.b32.cont [2/16] 0.0, 128
    %161 = vxpose.xlu0.b32.cont [3/16] 0.0, 128
    %162 = vxpose.xlu0.b32.cont [4/16] 0.0, 128
    %163 = vxpose.xlu0.b32.cont [5/16] 0.0, 128
    %164 = vxpose.xlu0.b32.cont [6/16] 0.0, 128
    %165 = vxpose.xlu0.b32.cont [7/16] 0.0, 128
    %166 = vxpose.xlu0.b32.cont [8/16] 0.0, 128
    %167 = vxpose.xlu0.b32.cont [9/16] 0.0, 128
    %168 = vxpose.xlu0.b32.cont [10/16] 0.0, 128
    %169 = vxpose.xlu0.b32.cont [11/16] 0.0, 128
    %170 = vxpose.xlu0.b32.cont [12/16] 0.0, 128
    %171 = vxpose.xlu0.b32.cont [13/16] 0.0, 128
    %172 = vxpose.xlu0.b32.cont [14/16] 0.0, 128
    %173 = vxpose.xlu0.b32.cont [15/16] 0.0, 128
    %174 = vxpose.xlu0.b32.end [16/16] 0.0, 128
    %v175 = vpop.trf.xlu0
    %v176 = vpop.trf.xlu0
    %v177 = vpop.trf.xlu0
    %v178 = vpop.trf.xlu0
    %v179 = vpop.trf.xlu0
    %v180 = vpop.trf.xlu0
    %v181 = vpop.trf.xlu0
    %v182 = vpop.trf.xlu0
    %v183 = vpop.trf.xlu0
    %v184 = vpop.trf.xlu0
    %v185 = vpop.trf.xlu0
    %v186 = vpop.trf.xlu0
    %v187 = vpop.trf.xlu0
    %v188 = vpop.trf.xlu0
    %v189 = vpop.trf.xlu0
    %v190 = vpop.trf.xlu0
    %vm191 = vcmask 57344
    %192 = vst.msk [vmem:[#allocation5] sm:$0x1] %vm191, %v175
    // Predicated region
    $region18: #{binary_classifier_forward.1} parent=1 // pred_check
      _
    $region19: #{binary_classifier_forward.1} parent=1 // pred_check_branch
      %194 = sbr.rel (0) target = $region21
    $region20: #{binary_classifier_forward.1} parent=1 // pred_region
      %s196 = ssub.s32 16, 16
      %197 = vsyncadd [#allocation4], %s196
      %s199 = sshll.u32 [#allocation5], 4
      %s200 = int_to_ptr.vmem [resolvable:$true] %s199
      %202 = dma.vmem_to_hbm [thread:$0]  %s200, 16, %s3, [#allocation4]
    $region21: #{binary_classifier_forward.1} parent=1 // pred_fallthru
      _
    // Predicated region
    $region22: #{binary_classifier_forward.1} parent=1 // pred_check
      _
    $region23: #{binary_classifier_forward.1} parent=1 // pred_check_branch
      %204 = sbr.rel (0) target = $region25
    $region24: #{binary_classifier_forward.1} parent=1 // pred_region
      %205 = dma.done [#allocation4], 16
    $region25: #{binary_classifier_forward.1} parent=1 // pred_fallthru
      _
    %206 = vsyncpa [#allocation3], 1
    %207 = vsyncpa [#allocation4], 1

</llo_original>
